<compile_context>
chip_gen: v7x
topology: tpu7x:2x2x1
jax: 0.10.0
libtpu: 0.0.40
codegen_flags: <defaults>
</compile_context>

<pallas_src>
import jax
import jax.numpy as jnp
from jax.experimental import pallas as pl
from jax.experimental.pallas import tpu as pltpu

_LANE = 128      # vreg lane width
_SUBLANE = 8     # vreg sublane count (f32)


def _round_up(x, m):
    return ((x + m - 1) // m) * m


def _nbeats_generic_kernel(
    x_ref,
    w0_ref, b0_ref,
    w1_ref, b1_ref,
    w2_ref, b2_ref,
    w3_ref, b3_ref,
    wtheta_ref,                 # [wtb | wtf] fused, bias-free, bf16
    whb_ref, bias_b_ref,        # theta -> backcast head (zero rows mask theta_f)
    whf_ref, bias_f_ref,        # theta -> forecast head (zero rows mask theta_b)
    back_ref, fore_ref,
):
    bf16 = jnp.bfloat16
    h = x_ref[...].astype(bf16)

    # fc stack: 4 x (Linear + ReLU); bf16 operands, f32 accumulation.
    for w_ref, b_ref in ((w0_ref, b0_ref), (w1_ref, b1_ref),
                         (w2_ref, b2_ref), (w3_ref, b3_ref)):
        acc = jnp.dot(h, w_ref[...], preferred_element_type=jnp.float32)
        h = jnp.maximum(acc + b_ref[...], 0.0).astype(bf16)

    # fused theta projections (bias-free) + ReLU: theta = [theta_b | theta_f | 0]
    theta = jnp.maximum(
        jnp.dot(h, wtheta_ref[...], preferred_element_type=jnp.float32), 0.0
    ).astype(bf16)

    # heads: weights are zero outside their own theta half, so the fused theta
    # feeds both dots without cross-contamination.
    back_ref[...] = (
        jnp.dot(theta, whb_ref[...], preferred_element_type=jnp.float32)
        + bias_b_ref[...]
    ).astype(back_ref.dtype)
    fore_ref[...] = (
        jnp.dot(theta, whf_ref[...], preferred_element_type=jnp.float32)
        + bias_f_ref[...]
    ).astype(fore_ref.dtype)


def nbeats_generic_block(x, params, *, batch_tile=1024):
    """x: (batch, backcast_length) f32.  Returns (backcast, forecast)."""
    batch, backcast_length = x.shape
    units = params["w0"].shape[1]
    thetas_dim = params["wtb"].shape[1]
    forecast_length = params["wfore"].shape[1]

    f32 = jnp.float32
    bf16 = jnp.bfloat16

    # lane-padded hidden dims (inputs/outputs keep their real last dims)
    units_pad = _round_up(units, _LANE)
    theta2_pad = _round_up(2 * thetas_dim, _LANE)

    # --- batch tiling ------------------------------------------------------
    b8 = _round_up(batch, _SUBLANE)
    tb = min(_round_up(batch_tile, _SUBLANE), b8)
    # v7x: guarantee >= 2 grid steps so the "parallel" axis spans both TCs.
    if b8 >= 2 * _SUBLANE:
        tb = min(tb, _round_up(pl.cdiv(b8, 2), _SUBLANE))
    batch_pad = _round_up(batch, tb)
    grid = (batch_pad // tb,)

    x_p = x.astype(f32)
    if batch_pad != batch:
        x_p = jnp.pad(x_p, ((0, batch_pad - batch), (0, 0)))

    # --- pad / fuse parameters (zero padding preserves the math exactly) ---
    def pad_w(a, rows, cols):
        a = a.astype(f32)
        a = jnp.pad(a, ((0, rows - a.shape[0]), (0, cols - a.shape[1])))
        return a.astype(bf16)

    def pad_b(a, cols):
        a = a.astype(f32)
        return jnp.pad(a, ((0, 0), (0, cols - a.shape[1])))

    w0 = pad_w(params["w0"], backcast_length, units_pad)   # K = real input dim
    b0 = pad_b(params["b0"], units_pad)
    w1 = pad_w(params["w1"], units_pad, units_pad); b1 = pad_b(params["b1"], units_pad)
    w2 = pad_w(params["w2"], units_pad, units_pad); b2 = pad_b(params["b2"], units_pad)
    w3 = pad_w(params["w3"], units_pad, units_pad); b3 = pad_b(params["b3"], units_pad)

    # fused theta projection weight: (units, 2*thetas_dim) -> padded, bf16
    wtheta = pad_w(jnp.concatenate([params["wtb"], params["wtf"]], axis=1),
                   units_pad, theta2_pad)

    # split heads over the fused theta: zero rows select the correct half
    whb = jnp.zeros((theta2_pad, backcast_length), f32)
    whb = whb.at[:thetas_dim, :].set(params["wback"].astype(f32)).astype(bf16)
    whf = jnp.zeros((theta2_pad, forecast_length), f32)
    whf = whf.at[thetas_dim:2 * thetas_dim, :].set(params["wfore"].astype(f32)).astype(bf16)
    bias_b = params["bback"].astype(f32)                    # (1, backcast_length)
    bias_f = params["bfore"].astype(f32)                    # (1, forecast_length)

    args = (x_p, w0, b0, w1, b1, w2, b2, w3, b3, wtheta, whb, bias_b, whf, bias_f)

    def resident(a):
        # full-array block, same block index every step -> stays in VMEM
        return pl.BlockSpec(a.shape, lambda i: (0, 0))

    in_specs = [pl.BlockSpec((tb, backcast_length), lambda i: (i, 0))] + \
               [resident(a) for a in args[1:]]
    out_specs = [pl.BlockSpec((tb, backcast_length), lambda i: (i, 0)),
                 pl.BlockSpec((tb, forecast_length), lambda i: (i, 0))]
    out_shape = (jax.ShapeDtypeStruct((batch_pad, backcast_length), f32),
                 jax.ShapeDtypeStruct((batch_pad, forecast_length), f32))

    # VMEM budget: actual need + margin, capped well below v7x's 64 MiB total.
    bytes_w = sum(int(a.size) for a in (w0, w1, w2, w3, wtheta, whb, whf)) * 2 * 2
    bytes_bias = sum(int(a.size) for a in (b0, b1, b2, b3, bias_b, bias_f)) * 4 * 2
    bytes_stream = 2 * tb * (2 * backcast_length + forecast_length) * 4
    bytes_tmp = 4 * tb * max(units_pad, theta2_pad) * 4
    vmem_bytes = int(min(16 * 1024 * 1024,
                         bytes_w + bytes_bias + bytes_stream + bytes_tmp
                         + 4 * 1024 * 1024))

    back_p, fore_p = pl.pallas_call(
        _nbeats_generic_kernel,
        out_shape=out_shape,
        grid=grid,
        in_specs=in_specs,
        out_specs=out_specs,
        compiler_params=pltpu.CompilerParams(
            dimension_semantics=("parallel",),
            vmem_limit_bytes=vmem_bytes),
    )(*args)

    if batch_pad != batch:
        back_p = back_p[:batch]
        fore_p = fore_p[:batch]
    return back_p, fore_p


def make_params(key, units, thetas_dim, backcast_length, forecast_length):
    """Deterministic synthetic parameters, stored as (in, out) matrices."""
    ks = jax.random.split(key, 8)

    def lin(k, fan_in, fan_out):
        # uniform(-1/sqrt(fan_in), 1/sqrt(fan_in)), same scale as torch default
        bound = 1.0 / jnp.sqrt(jnp.float32(fan_in))
        kw, kb = jax.random.split(k)
        w = jax.random.uniform(kw, (fan_in, fan_out), jnp.float32, -bound, bound)
        b = jax.random.uniform(kb, (1, fan_out), jnp.float32, -bound, bound)
        return w, b

    w0, b0 = lin(ks[0], backcast_length, units)
    w1, b1 = lin(ks[1], units, units)
    w2, b2 = lin(ks[2], units, units)
    w3, b3 = lin(ks[3], units, units)
    wtb, _ = lin(ks[4], units, thetas_dim)          # bias-free
    wtf, _ = lin(ks[5], units, thetas_dim)          # bias-free
    wback, bback = lin(ks[6], thetas_dim, backcast_length)
    wfore, bfore = lin(ks[7], thetas_dim, forecast_length)

    return dict(w0=w0, b0=b0, w1=w1, b1=b1, w2=w2, b2=b2, w3=w3, b3=b3,
                wtb=wtb, wtf=wtf, wback=wback, bback=bback,
                wfore=wfore, bfore=bfore)


def reference_forward(x, p):
    """Pure-JAX reference mirroring the PyTorch module (f32)."""
    h = jax.nn.relu(x @ p["w0"] + p["b0"])
    h = jax.nn.relu(h @ p["w1"] + p["b1"])
    h = jax.nn.relu(h @ p["w2"] + p["b2"])
    h = jax.nn.relu(h @ p["w3"] + p["b3"])
    theta_b = jax.nn.relu(h @ p["wtb"])
    theta_f = jax.nn.relu(h @ p["wtf"])
    return theta_b @ p["wback"] + p["bback"], theta_f @ p["wfore"] + p["bfore"]


if __name__ == "__main__":
    # Shapes implied by the module defaults (kept small):
    units = 32
    thetas_dim = 8
    backcast_length = 10
    forecast_length = 5
    batch = 8

    key = jax.random.PRNGKey(0)
    k_x, k_p = jax.random.split(key)

    x = jax.random.normal(k_x, (batch, backcast_length), jnp.float32)
    params = make_params(k_p, units, thetas_dim, backcast_length, forecast_length)

    backcast, forecast = nbeats_generic_block(x, params)
    jax.block_until_ready((backcast, forecast))

    # Verify against the pure-JAX f32 reference.  The kernel feeds the MXU in
    # bf16 (f32 accumulation), which matches TPU default-precision matmuls, so
    # a moderate tolerance is used for the smoke check.
    ref_b, ref_f = reference_forward(x, params)
    assert backcast.shape == (batch, backcast_length)
    assert forecast.shape == (batch, forecast_length)
    assert jnp.allclose(backcast, ref_b, atol=2e-2, rtol=2e-2)
    assert jnp.allclose(forecast, ref_f, atol=2e-2, rtol=2e-2)

    print("KERNEL_OK")
</pallas_src>

<mosaic_0001>
module attributes {stable_mosaic.version = 11 : i64} {
  func.func @_nbeats_generic_kernel(%arg0: i32, %arg1: memref<8x10xf32, #tpu.memory_space<vmem>>, %arg2: memref<10x128xbf16, #tpu.memory_space<vmem>>, %arg3: memref<1x128xf32, #tpu.memory_space<vmem>>, %arg4: memref<128x128xbf16, #tpu.memory_space<vmem>>, %arg5: memref<1x128xf32, #tpu.memory_space<vmem>>, %arg6: memref<128x128xbf16, #tpu.memory_space<vmem>>, %arg7: memref<1x128xf32, #tpu.memory_space<vmem>>, %arg8: memref<128x128xbf16, #tpu.memory_space<vmem>>, %arg9: memref<1x128xf32, #tpu.memory_space<vmem>>, %arg10: memref<128x128xbf16, #tpu.memory_space<vmem>>, %arg11: memref<128x10xbf16, #tpu.memory_space<vmem>>, %arg12: memref<1x10xf32, #tpu.memory_space<vmem>>, %arg13: memref<128x5xbf16, #tpu.memory_space<vmem>>, %arg14: memref<1x5xf32, #tpu.memory_space<vmem>>, %arg15: memref<8x10xf32, #tpu.memory_space<vmem>>, %arg16: memref<8x5xf32, #tpu.memory_space<vmem>>) attributes {dimension_semantics = [#tpu.dimension_semantics<parallel>], iteration_bounds = array<i64: 1>, scalar_prefetch = 0 : i64, scratch_operands = 0 : i64, tpu.core_type = #tpu.core_type<tc>, window_params = [{transform_indices = @transform_0, window_bounds = array<i64: 8, 10>}, {pipeline_mode = #tpu.pipeline_mode<synchronous>, transform_indices = @transform_1, window_bounds = array<i64: 10, 128>}, {pipeline_mode = #tpu.pipeline_mode<synchronous>, transform_indices = @transform_2, window_bounds = array<i64: 1, 128>}, {pipeline_mode = #tpu.pipeline_mode<synchronous>, transform_indices = @transform_3, window_bounds = array<i64: 128, 128>}, {pipeline_mode = #tpu.pipeline_mode<synchronous>, transform_indices = @transform_4, window_bounds = array<i64: 1, 128>}, {pipeline_mode = #tpu.pipeline_mode<synchronous>, transform_indices = @transform_5, window_bounds = array<i64: 128, 128>}, {pipeline_mode = #tpu.pipeline_mode<synchronous>, transform_indices = @transform_6, window_bounds = array<i64: 1, 128>}, {pipeline_mode = #tpu.pipeline_mode<synchronous>, transform_indices = @transform_7, window_bounds = array<i64: 128, 128>}, {pipeline_mode = #tpu.pipeline_mode<synchronous>, transform_indices = @transform_8, window_bounds = array<i64: 1, 128>}, {pipeline_mode = #tpu.pipeline_mode<synchronous>, transform_indices = @transform_9, window_bounds = array<i64: 128, 128>}, {pipeline_mode = #tpu.pipeline_mode<synchronous>, transform_indices = @transform_10, window_bounds = array<i64: 128, 10>}, {pipeline_mode = #tpu.pipeline_mode<synchronous>, transform_indices = @transform_11, window_bounds = array<i64: 1, 10>}, {pipeline_mode = #tpu.pipeline_mode<synchronous>, transform_indices = @transform_12, window_bounds = array<i64: 128, 5>}, {pipeline_mode = #tpu.pipeline_mode<synchronous>, transform_indices = @transform_13, window_bounds = array<i64: 1, 5>}, {transform_indices = @transform_14, window_bounds = array<i64: 8, 10>}, {transform_indices = @transform_15, window_bounds = array<i64: 8, 5>}]} {
    %c0 = arith.constant 0 : index
    %c0_0 = arith.constant 0 : index
    %0 = vector.load %arg1[%c0, %c0_0] : memref<8x10xf32, #tpu.memory_space<vmem>>, vector<8x10xf32>
    %1 = arith.truncf %0 : vector<8x10xf32> to vector<8x10xbf16>
    %c0_1 = arith.constant 0 : index
    %c0_2 = arith.constant 0 : index
    %2 = vector.load %arg2[%c0_1, %c0_2] : memref<10x128xbf16, #tpu.memory_space<vmem>>, vector<10x128xbf16>
    %cst = arith.constant dense<0.000000e+00> : vector<8x128xf32>
    %3 = tpu.matmul %1, %2, %cst {dimension_numbers = #tpu.dot_dimension_numbers<[1], [0], [0], [1], [0, 0, 1, 1], [], []>} : vector<8x10xbf16>, vector<10x128xbf16>, vector<8x128xf32> -> vector<8x128xf32>
    %c0_3 = arith.constant 0 : index
    %c0_4 = arith.constant 0 : index
    %4 = vector.load %arg3[%c0_3, %c0_4] : memref<1x128xf32, #tpu.memory_space<vmem>>, vector<1x128xf32>
    %5 = vector.broadcast %4 : vector<1x128xf32> to vector<8x128xf32>
    %6 = arith.addf %3, %5 : vector<8x128xf32>
    %cst_5 = arith.constant 0.000000e+00 : f32
    %7 = vector.broadcast %cst_5 : f32 to vector<8x128xf32>
    %8 = arith.maximumf %6, %7 : vector<8x128xf32>
    %9 = arith.truncf %8 : vector<8x128xf32> to vector<8x128xbf16>
    %c0_6 = arith.constant 0 : index
    %c0_7 = arith.constant 0 : index
    %10 = vector.load %arg4[%c0_6, %c0_7] : memref<128x128xbf16, #tpu.memory_space<vmem>>, vector<128x128xbf16>
    %cst_8 = arith.constant dense<0.000000e+00> : vector<8x128xf32>
    %11 = tpu.matmul %9, %10, %cst_8 {dimension_numbers = #tpu.dot_dimension_numbers<[1], [0], [0], [1], [0, 0, 1, 1], [], []>} : vector<8x128xbf16>, vector<128x128xbf16>, vector<8x128xf32> -> vector<8x128xf32>
    %c0_9 = arith.constant 0 : index
    %c0_10 = arith.constant 0 : index
    %12 = vector.load %arg5[%c0_9, %c0_10] : memref<1x128xf32, #tpu.memory_space<vmem>>, vector<1x128xf32>
    %13 = vector.broadcast %12 : vector<1x128xf32> to vector<8x128xf32>
    %14 = arith.addf %11, %13 : vector<8x128xf32>
    %cst_11 = arith.constant 0.000000e+00 : f32
    %15 = vector.broadcast %cst_11 : f32 to vector<8x128xf32>
    %16 = arith.maximumf %14, %15 : vector<8x128xf32>
    %17 = arith.truncf %16 : vector<8x128xf32> to vector<8x128xbf16>
    %c0_12 = arith.constant 0 : index
    %c0_13 = arith.constant 0 : index
    %18 = vector.load %arg6[%c0_12, %c0_13] : memref<128x128xbf16, #tpu.memory_space<vmem>>, vector<128x128xbf16>
    %cst_14 = arith.constant dense<0.000000e+00> : vector<8x128xf32>
    %19 = tpu.matmul %17, %18, %cst_14 {dimension_numbers = #tpu.dot_dimension_numbers<[1], [0], [0], [1], [0, 0, 1, 1], [], []>} : vector<8x128xbf16>, vector<128x128xbf16>, vector<8x128xf32> -> vector<8x128xf32>
    %c0_15 = arith.constant 0 : index
    %c0_16 = arith.constant 0 : index
    %20 = vector.load %arg7[%c0_15, %c0_16] : memref<1x128xf32, #tpu.memory_space<vmem>>, vector<1x128xf32>
    %21 = vector.broadcast %20 : vector<1x128xf32> to vector<8x128xf32>
    %22 = arith.addf %19, %21 : vector<8x128xf32>
    %cst_17 = arith.constant 0.000000e+00 : f32
    %23 = vector.broadcast %cst_17 : f32 to vector<8x128xf32>
    %24 = arith.maximumf %22, %23 : vector<8x128xf32>
    %25 = arith.truncf %24 : vector<8x128xf32> to vector<8x128xbf16>
    %c0_18 = arith.constant 0 : index
    %c0_19 = arith.constant 0 : index
    %26 = vector.load %arg8[%c0_18, %c0_19] : memref<128x128xbf16, #tpu.memory_space<vmem>>, vector<128x128xbf16>
    %cst_20 = arith.constant dense<0.000000e+00> : vector<8x128xf32>
    %27 = tpu.matmul %25, %26, %cst_20 {dimension_numbers = #tpu.dot_dimension_numbers<[1], [0], [0], [1], [0, 0, 1, 1], [], []>} : vector<8x128xbf16>, vector<128x128xbf16>, vector<8x128xf32> -> vector<8x128xf32>
    %c0_21 = arith.constant 0 : index
    %c0_22 = arith.constant 0 : index
    %28 = vector.load %arg9[%c0_21, %c0_22] : memref<1x128xf32, #tpu.memory_space<vmem>>, vector<1x128xf32>
    %29 = vector.broadcast %28 : vector<1x128xf32> to vector<8x128xf32>
    %30 = arith.addf %27, %29 : vector<8x128xf32>
    %cst_23 = arith.constant 0.000000e+00 : f32
    %31 = vector.broadcast %cst_23 : f32 to vector<8x128xf32>
    %32 = arith.maximumf %30, %31 : vector<8x128xf32>
    %33 = arith.truncf %32 : vector<8x128xf32> to vector<8x128xbf16>
    %c0_24 = arith.constant 0 : index
    %c0_25 = arith.constant 0 : index
    %34 = vector.load %arg10[%c0_24, %c0_25] : memref<128x128xbf16, #tpu.memory_space<vmem>>, vector<128x128xbf16>
    %cst_26 = arith.constant dense<0.000000e+00> : vector<8x128xf32>
    %35 = tpu.matmul %33, %34, %cst_26 {dimension_numbers = #tpu.dot_dimension_numbers<[1], [0], [0], [1], [0, 0, 1, 1], [], []>} : vector<8x128xbf16>, vector<128x128xbf16>, vector<8x128xf32> -> vector<8x128xf32>
    %cst_27 = arith.constant 0.000000e+00 : f32
    %36 = vector.broadcast %cst_27 : f32 to vector<8x128xf32>
    %37 = arith.maximumf %35, %36 : vector<8x128xf32>
    %38 = arith.truncf %37 : vector<8x128xf32> to vector<8x128xbf16>
    %c0_28 = arith.constant 0 : index
    %c0_29 = arith.constant 0 : index
    %39 = vector.load %arg11[%c0_28, %c0_29] : memref<128x10xbf16, #tpu.memory_space<vmem>>, vector<128x10xbf16>
    %cst_30 = arith.constant dense<0.000000e+00> : vector<8x10xf32>
    %40 = tpu.matmul %38, %39, %cst_30 {dimension_numbers = #tpu.dot_dimension_numbers<[1], [0], [0], [1], [0, 0, 1, 1], [], []>} : vector<8x128xbf16>, vector<128x10xbf16>, vector<8x10xf32> -> vector<8x10xf32>
    %c0_31 = arith.constant 0 : index
    %c0_32 = arith.constant 0 : index
    %41 = vector.load %arg12[%c0_31, %c0_32] : memref<1x10xf32, #tpu.memory_space<vmem>>, vector<1x10xf32>
    %42 = vector.broadcast %41 : vector<1x10xf32> to vector<8x10xf32>
    %43 = arith.addf %40, %42 : vector<8x10xf32>
    %c0_33 = arith.constant 0 : index
    %c0_34 = arith.constant 0 : index
    %44 = vector.load %arg15[%c0_33, %c0_34] : memref<8x10xf32, #tpu.memory_space<vmem>>, vector<8x10xf32>
    tpu.vector_store %arg15[%c0_33, %c0_34], %43 {strides = array<i32>} : memref<8x10xf32, #tpu.memory_space<vmem>>, vector<8x10xf32>,
    %c0_35 = arith.constant 0 : index
    %c0_36 = arith.constant 0 : index
    %45 = vector.load %arg13[%c0_35, %c0_36] : memref<128x5xbf16, #tpu.memory_space<vmem>>, vector<128x5xbf16>
    %cst_37 = arith.constant dense<0.000000e+00> : vector<8x5xf32>
    %46 = tpu.matmul %38, %45, %cst_37 {dimension_numbers = #tpu.dot_dimension_numbers<[1], [0], [0], [1], [0, 0, 1, 1], [], []>} : vector<8x128xbf16>, vector<128x5xbf16>, vector<8x5xf32> -> vector<8x5xf32>
    %c0_38 = arith.constant 0 : index
    %c0_39 = arith.constant 0 : index
    %47 = vector.load %arg14[%c0_38, %c0_39] : memref<1x5xf32, #tpu.memory_space<vmem>>, vector<1x5xf32>
    %48 = vector.broadcast %47 : vector<1x5xf32> to vector<8x5xf32>
    %49 = arith.addf %46, %48 : vector<8x5xf32>
    %c0_40 = arith.constant 0 : index
    %c0_41 = arith.constant 0 : index
    %50 = vector.load %arg16[%c0_40, %c0_41] : memref<8x5xf32, #tpu.memory_space<vmem>>, vector<8x5xf32>
    tpu.vector_store %arg16[%c0_40, %c0_41], %49 {strides = array<i32>} : memref<8x5xf32, #tpu.memory_space<vmem>>, vector<8x5xf32>,
    return
  }
  func.func @transform_0(%arg0: i32) -> (i32, i32) {
    %c0_i32 = arith.constant 0 : i32
    %c0_i32_0 = arith.constant 0 : i32
    return %arg0, %c0_i32 : i32, i32
  }
  func.func @transform_1(%arg0: i32) -> (i32, i32) {
    %c0_i32 = arith.constant 0 : i32
    %c0_i32_0 = arith.constant 0 : i32
    %c0_i32_1 = arith.constant 0 : i32
    return %c0_i32, %c0_i32_0 : i32, i32
  }
  func.func @transform_2(%arg0: i32) -> (i32, i32) {
    %c0_i32 = arith.constant 0 : i32
    %c0_i32_0 = arith.constant 0 : i32
    %c0_i32_1 = arith.constant 0 : i32
    return %c0_i32, %c0_i32_0 : i32, i32
  }
  func.func @transform_3(%arg0: i32) -> (i32, i32) {
    %c0_i32 = arith.constant 0 : i32
    %c0_i32_0 = arith.constant 0 : i32
    %c0_i32_1 = arith.constant 0 : i32
    return %c0_i32, %c0_i32_0 : i32, i32
  }
  func.func @transform_4(%arg0: i32) -> (i32, i32) {
    %c0_i32 = arith.constant 0 : i32
    %c0_i32_0 = arith.constant 0 : i32
    %c0_i32_1 = arith.constant 0 : i32
    return %c0_i32, %c0_i32_0 : i32, i32
  }
  func.func @transform_5(%arg0: i32) -> (i32, i32) {
    %c0_i32 = arith.constant 0 : i32
    %c0_i32_0 = arith.constant 0 : i32
    %c0_i32_1 = arith.constant 0 : i32
    return %c0_i32, %c0_i32_0 : i32, i32
  }
  func.func @transform_6(%arg0: i32) -> (i32, i32) {
    %c0_i32 = arith.constant 0 : i32
    %c0_i32_0 = arith.constant 0 : i32
    %c0_i32_1 = arith.constant 0 : i32
    return %c0_i32, %c0_i32_0 : i32, i32
  }
  func.func @transform_7(%arg0: i32) -> (i32, i32) {
    %c0_i32 = arith.constant 0 : i32
    %c0_i32_0 = arith.constant 0 : i32
    %c0_i32_1 = arith.constant 0 : i32
    return %c0_i32, %c0_i32_0 : i32, i32
  }
  func.func @transform_8(%arg0: i32) -> (i32, i32) {
    %c0_i32 = arith.constant 0 : i32
    %c0_i32_0 = arith.constant 0 : i32
    %c0_i32_1 = arith.constant 0 : i32
    return %c0_i32, %c0_i32_0 : i32, i32
  }
  func.func @transform_9(%arg0: i32) -> (i32, i32) {
    %c0_i32 = arith.constant 0 : i32
    %c0_i32_0 = arith.constant 0 : i32
    %c0_i32_1 = arith.constant 0 : i32
    return %c0_i32, %c0_i32_0 : i32, i32
  }
  func.func @transform_10(%arg0: i32) -> (i32, i32) {
    %c0_i32 = arith.constant 0 : i32
    %c0_i32_0 = arith.constant 0 : i32
    %c0_i32_1 = arith.constant 0 : i32
    return %c0_i32, %c0_i32_0 : i32, i32
  }
  func.func @transform_11(%arg0: i32) -> (i32, i32) {
    %c0_i32 = arith.constant 0 : i32
    %c0_i32_0 = arith.constant 0 : i32
    %c0_i32_1 = arith.constant 0 : i32
    return %c0_i32, %c0_i32_0 : i32, i32
  }
  func.func @transform_12(%arg0: i32) -> (i32, i32) {
    %c0_i32 = arith.constant 0 : i32
    %c0_i32_0 = arith.constant 0 : i32
    %c0_i32_1 = arith.constant 0 : i32
    return %c0_i32, %c0_i32_0 : i32, i32
  }
  func.func @transform_13(%arg0: i32) -> (i32, i32) {
    %c0_i32 = arith.constant 0 : i32
    %c0_i32_0 = arith.constant 0 : i32
    %c0_i32_1 = arith.constant 0 : i32
    return %c0_i32, %c0_i32_0 : i32, i32
  }
  func.func @transform_14(%arg0: i32) -> (i32, i32) {
    %c0_i32 = arith.constant 0 : i32
    %c0_i32_0 = arith.constant 0 : i32
    return %arg0, %c0_i32 : i32, i32
  }
  func.func @transform_15(%arg0: i32) -> (i32, i32) {
    %c0_i32 = arith.constant 0 : i32
    %c0_i32_0 = arith.constant 0 : i32
    return %arg0, %c0_i32 : i32, i32
  }
}

</mosaic_0001>

<llo_original>
// kernel: tpu_custom_call.1
$region0: #{tpu_custom_call.1}
  #allocation0 [shape = 'u32[]', space=smem, size = 0x4, offset = 0x4, fixed_abs, tag = 'smem constant byte address 0x4 - core index']
  #allocation1 [shape = 'u32[144,128]{1,0:T(1,128)}', space=vmem, size = 0x12000, scoped, tag = 'internal scratch']
  %s0 = inlined_call_operand.vmem [shape: f32[8,10], index: 0, kind: input, shape index: {}]
  %s1 = inlined_call_operand.hbm [shape: bf16[10,128], index: 1, kind: input, shape index: {}]
  %s2 = inlined_call_operand.vmem [shape: f32[1,128], index: 2, kind: input, shape index: {}]
  %s3 = inlined_call_operand.vmem [shape: bf16[128,128], index: 3, kind: input, shape index: {}]
  %s4 = inlined_call_operand.vmem [shape: f32[1,128], index: 4, kind: input, shape index: {}]
  %s5 = inlined_call_operand.vmem [shape: bf16[128,128], index: 5, kind: input, shape index: {}]
  %s6 = inlined_call_operand.vmem [shape: f32[1,128], index: 6, kind: input, shape index: {}]
  %s7 = inlined_call_operand.hbm [shape: bf16[128,128], index: 7, kind: input, shape index: {}]
  %s8 = inlined_call_operand.vmem [shape: f32[1,128], index: 8, kind: input, shape index: {}]
  %s9 = inlined_call_operand.hbm [shape: bf16[128,128], index: 9, kind: input, shape index: {}]
  %s10 = inlined_call_operand.vmem [shape: bf16[128,10], index: 10, kind: input, shape index: {}]
  %s11 = inlined_call_operand.vmem [shape: f32[1,10], index: 11, kind: input, shape index: {}]
  %s12 = inlined_call_operand.vmem [shape: bf16[128,5], index: 12, kind: input, shape index: {}]
  %s13 = inlined_call_operand.vmem [shape: f32[1,5], index: 13, kind: input, shape index: {}]
  %s14 = inlined_call_operand.hbm [shape: f32[8,10], index: 14, kind: output, shape index: {0}]
  %s15 = inlined_call_operand.hbm [shape: f32[8,5], index: 15, kind: output, shape index: {1}]
  %16 = xla_tuple %s14, %s15
  %s17 = sld [smem:[#allocation0]]
  $region86: #{tpu_custom_call.1} parent=0
    _
  %s19 = ssub.s32 1, %s17
  %s20 = scalar_select 0, %s19, %s17
  $region1: #{tpu_custom_call.1} parent=0
    #allocation2 [shape = 'u8[4096]{0}', space=vmem, size = 0x1000, scoped, tag = 'input window, operand 1, single buffered']
    #allocation3 [shape = 's32[1]{0}', space=sflag, size = 0x4, scoped, tag = 'scoped memory for tpu_custom_call.1']
    #allocation4 [shape = 's32[1]{0}', space=sflag, size = 0x4, scoped, tag = 'scoped memory for tpu_custom_call.1']
    #allocation5 [shape = 'u8[32768]{0}', space=vmem, size = 0x8000, scoped, tag = 'input window, operand 7, single buffered']
    #allocation6 [shape = 's32[1]{0}', space=sflag, size = 0x4, scoped, tag = 'scoped memory for tpu_custom_call.1']
    #allocation7 [shape = 'u8[32768]{0}', space=vmem, size = 0x8000, scoped, tag = 'input window, operand 9, single buffered']
    #allocation8 [shape = 'u8[4096]{0}', space=vmem, size = 0x1000, scoped, tag = 'output window, operand 0, single buffered']
    #allocation9 [shape = 'u8[4096]{0}', space=vmem, size = 0x1000, scoped, tag = 'output window, operand 1, single buffered']
    #allocation10 [shape = 's32[1]{0}', space=sflag, size = 0x4, scoped, tag = 'scoped memory for tpu_custom_call.1']
    %21 = vsyncpa [#allocation3], 0
    %22 = vsyncpa [#allocation6], 0
    %23 = vsyncpa [#allocation4], 0
    %24 = vsyncpa [#allocation10], 0
    // Predicated region
    $region2: #{tpu_custom_call.1} parent=1 // pred_check
      _
    $region3: #{tpu_custom_call.1} parent=1 // pred_check_branch
      %26 = sbr.rel (0) target = $region5
    $region4: #{tpu_custom_call.1} parent=1 // pred_region
      _
    $region5: #{tpu_custom_call.1} parent=1 // pred_fallthru
      _
    // Predicated region
    $region6: #{tpu_custom_call.1} parent=1 // pred_check
      _
    $region7: #{tpu_custom_call.1} parent=1 // pred_check_branch
      %28 = sbr.rel (0) target = $region9
    $region8: #{tpu_custom_call.1} parent=1 // pred_region
      %s30 = ssub.s32 128, 128
      %31 = vsyncadd [#allocation3], %s30
      %s32 = sshll.u32 [#allocation2], 4
      %s33 = int_to_ptr.vmem [resolvable:$true] %s32
      %38 = dma.hbm_to_vmem [thread:$0]  %s1, 128, %s33, [#allocation3], 64, 64, 4
    $region9: #{tpu_custom_call.1} parent=1 // pred_fallthru
      _
    // Predicated region
    $region10: #{tpu_custom_call.1} parent=1 // pred_check
      _
    $region11: #{tpu_custom_call.1} parent=1 // pred_check_branch
      %40 = sbr.rel (0) target = $region13
    $region12: #{tpu_custom_call.1} parent=1 // pred_region
      _
    $region13: #{tpu_custom_call.1} parent=1 // pred_fallthru
      _
    // Predicated region
    $region14: #{tpu_custom_call.1} parent=1 // pred_check
      _
    $region15: #{tpu_custom_call.1} parent=1 // pred_check_branch
      %42 = sbr.rel (0) target = $region17
    $region16: #{tpu_custom_call.1} parent=1 // pred_region
      _
    $region17: #{tpu_custom_call.1} parent=1 // pred_fallthru
      _
    // Predicated region
    $region18: #{tpu_custom_call.1} parent=1 // pred_check
      _
    $region19: #{tpu_custom_call.1} parent=1 // pred_check_branch
      %44 = sbr.rel (0) target = $region21
    $region20: #{tpu_custom_call.1} parent=1 // pred_region
      _
    $region21: #{tpu_custom_call.1} parent=1 // pred_fallthru
      _
    // Predicated region
    $region22: #{tpu_custom_call.1} parent=1 // pred_check
      _
    $region23: #{tpu_custom_call.1} parent=1 // pred_check_branch
      %46 = sbr.rel (0) target = $region25
    $region24: #{tpu_custom_call.1} parent=1 // pred_region
      _
    $region25: #{tpu_custom_call.1} parent=1 // pred_fallthru
      _
    // Predicated region
    $region26: #{tpu_custom_call.1} parent=1 // pred_check
      _
    $region27: #{tpu_custom_call.1} parent=1 // pred_check_branch
      %48 = sbr.rel (0) target = $region29
    $region28: #{tpu_custom_call.1} parent=1 // pred_region
      _
    $region29: #{tpu_custom_call.1} parent=1 // pred_fallthru
      _
    // Predicated region
    $region30: #{tpu_custom_call.1} parent=1 // pred_check
      _
    $region31: #{tpu_custom_call.1} parent=1 // pred_check_branch
      %50 = sbr.rel (0) target = $region33
    $region32: #{tpu_custom_call.1} parent=1 // pred_region
      %s52 = ssub.s32 1024, 1024
      %53 = vsyncadd [#allocation6], %s52
      %s54 = sshll.u32 [#allocation5], 4
      %s55 = int_to_ptr.vmem [resolvable:$true] %s54
      %60 = dma.hbm_to_vmem [thread:$0]  %s7, 1024, %s55, [#allocation6], 64, 64, 4
    $region33: #{tpu_custom_call.1} parent=1 // pred_fallthru
      _
    // Predicated region
    $region34: #{tpu_custom_call.1} parent=1 // pred_check
      _
    $region35: #{tpu_custom_call.1} parent=1 // pred_check_branch
      %62 = sbr.rel (0) target = $region37
    $region36: #{tpu_custom_call.1} parent=1 // pred_region
      _
    $region37: #{tpu_custom_call.1} parent=1 // pred_fallthru
      _
    // Predicated region
    $region38: #{tpu_custom_call.1} parent=1 // pred_check
      _
    $region39: #{tpu_custom_call.1} parent=1 // pred_check_branch
      %64 = sbr.rel (0) target = $region41
    $region40: #{tpu_custom_call.1} parent=1 // pred_region
      %s66 = ssub.s32 1024, 1024
      %67 = vsyncadd [#allocation6], %s66
      %s68 = sshll.u32 [#allocation7], 4
      %s69 = int_to_ptr.vmem [resolvable:$true] %s68
      %74 = dma.hbm_to_vmem [thread:$0]  %s9, 1024, %s69, [#allocation6], 64, 64, 4
    $region41: #{tpu_custom_call.1} parent=1 // pred_fallthru
      _
    // Predicated region
    $region42: #{tpu_custom_call.1} parent=1 // pred_check
      _
    $region43: #{tpu_custom_call.1} parent=1 // pred_check_branch
      %76 = sbr.rel (0) target = $region45
    $region44: #{tpu_custom_call.1} parent=1 // pred_region
      _
    $region45: #{tpu_custom_call.1} parent=1 // pred_fallthru
      _
    // Predicated region
    $region46: #{tpu_custom_call.1} parent=1 // pred_check
      _
    $region47: #{tpu_custom_call.1} parent=1 // pred_check_branch
      %78 = sbr.rel (0) target = $region49
    $region48: #{tpu_custom_call.1} parent=1 // pred_region
      _
    $region49: #{tpu_custom_call.1} parent=1 // pred_fallthru
      _
    // Predicated region
    $region50: #{tpu_custom_call.1} parent=1 // pred_check
      _
    $region51: #{tpu_custom_call.1} parent=1 // pred_check_branch
      %80 = sbr.rel (0) target = $region53
    $region52: #{tpu_custom_call.1} parent=1 // pred_region
      _
    $region53: #{tpu_custom_call.1} parent=1 // pred_fallthru
      _
    // Predicated region
    $region54: #{tpu_custom_call.1} parent=1 // pred_check
      _
    $region55: #{tpu_custom_call.1} parent=1 // pred_check_branch
      %82 = sbr.rel (0) target = $region57
    $region56: #{tpu_custom_call.1} parent=1 // pred_region
      _
    $region57: #{tpu_custom_call.1} parent=1 // pred_fallthru
      _
    // Predicated region
    $region58: #{tpu_custom_call.1} parent=1 // pred_check
      _
    $region59: #{tpu_custom_call.1} parent=1 // pred_check_branch
      %84 = sbr.rel (0) target = $region61
    $region60: #{tpu_custom_call.1} parent=1 // pred_region
      %85 = dma.done [#allocation3], 128
    $region61: #{tpu_custom_call.1} parent=1 // pred_fallthru
      _
    // Predicated region
    $region62: #{tpu_custom_call.1} parent=1 // pred_check
      _
    $region63: #{tpu_custom_call.1} parent=1 // pred_check_branch
      %87 = sbr.rel (0) target = $region65
    $region64: #{tpu_custom_call.1} parent=1 // pred_region
      %88 = dma.done [#allocation6], 1024
    $region65: #{tpu_custom_call.1} parent=1 // pred_fallthru
      _
    // Predicated region
    $region66: #{tpu_custom_call.1} parent=1 // pred_check
      _
    $region67: #{tpu_custom_call.1} parent=1 // pred_check_branch
      %90 = sbr.rel (0) target = $region69
    $region68: #{tpu_custom_call.1} parent=1 // pred_region
      %91 = dma.done [#allocation6], 1024
    $region69: #{tpu_custom_call.1} parent=1 // pred_fallthru
      _
    %v93 = vld [vmem:[%s0] sm:$0xff]
    %v94 = vpack.c.bf16 %v93, %v93
    %v95 = vld [vmem:[#allocation2] sm:$0xf]
    %v96 = vld [vmem:[#allocation2 + $0x4] sm:$0x1]
    %v97 = vld [vmem:[%s2] sm:$0x1]
    %v99 = vlaneseq
    %v100 = vshrl.u32 %v99, 7
    %v101 = vsub.s32 0, %v100
    %v102 = vrot.slane %v97, %v101
    %v106 = vunpack.c.l.b16 %v95
    %v107 = vunpack.c.l.b16 %v96
    %v108 = vpack.c.b16 %v107, %v106
    %vm109 = vcmask 80896
    %v111 = vsel %vm109, %v94, 0
    %vm113 = vcmask 1044480
    %v115 = vsel %vm113, %v108, 0
    %117 = vmatprep.subr.bf16.mxu0 0
    %118 = vmatpush1.bf16.msra.mxu0 %v115
    %119 = vmatprep.subr.bf16.mxu0 0
    %120 = vmatpush1.bf16.msra.mxu0 0
    %121 = vmatprep.subr.bf16.mxu0 0
    %122 = vmatpush1.bf16.msra.mxu0 0
    %123 = vmatprep.subr.bf16.mxu0 0
    %124 = vmatpush1.bf16.msra.mxu0 0
    %125 = vmatprep.subr.bf16.mxu0 0
    %126 = vmatpush1.bf16.msra.mxu0 0
    %127 = vmatprep.subr.bf16.mxu0 0
    %128 = vmatpush1.bf16.msra.mxu0 0
    %129 = vmatprep.subr.bf16.mxu0 0
    %130 = vmatpush1.bf16.msra.mxu0 0
    %131 = vmatprep.subr.bf16.mxu0 0
    %132 = vmatpush1.bf16.msra.mxu0 0
    %133 = vmatprep.subr.bf16.mxu0 0
    %134 = vmatpush1.bf16.msra.mxu0 0
    %135 = vmatprep.subr.bf16.mxu0 0
    %136 = vmatpush1.bf16.msra.mxu0 0
    %137 = vmatprep.subr.bf16.mxu0 0
    %138 = vmatpush1.bf16.msra.mxu0 0
    %139 = vmatprep.subr.bf16.mxu0 0
    %140 = vmatpush1.bf16.msra.mxu0 0
    %141 = vmatprep.subr.bf16.mxu0 0
    %142 = vmatpush1.bf16.msra.mxu0 0
    %143 = vmatprep.subr.bf16.mxu0 0
    %144 = vmatpush1.bf16.msra.mxu0 0
    %145 = vmatprep.subr.bf16.mxu0 0
    %146 = vmatpush1.bf16.msra.mxu0 0
    %147 = vmatprep.subr.bf16.mxu0 0
    %148 = vmatpush1.bf16.msra.mxu0 0
    %149 = vmatprep.mubr.bf16.mxu0 0
    %150 = vmatmul.mubr.bf16.gmra.mrb[0].mxu0 %v111
    %v151 = vpop.f32.mrb[0].mxu0
    %v152 = vadd.f32 %v102, %v151
    %v153 = vpop.f32.mrb[0].mxu0
    %v154 = vpop.f32.mrb[0].mxu0
    %v155 = vpop.f32.mrb[0].mxu0
    %156 = vdwg.mxu0
    %v157 = vmax.f32 %v152, 0.0
    %v158 = vpack.c.bf16 %v157, %v157
    %v159 = vld [vmem:[%s3] sm:$0xf]
    %v160 = vld [vmem:[%s3 + $0x4] sm:$0xf]
    %v161 = vld [vmem:[%s3 + $0x8] sm:$0xf]
    %v162 = vld [vmem:[%s3 + $0xc] sm:$0xf]
    %v163 = vld [vmem:[%s3 + $0x10] sm:$0xf]
    %v164 = vld [vmem:[%s3 + $0x14] sm:$0xf]
    %v165 = vld [vmem:[%s3 + $0x18] sm:$0xf]
    %v166 = vld [vmem:[%s3 + $0x1c] sm:$0xf]
    %v167 = vld [vmem:[%s3 + $0x20] sm:$0xf]
    %v168 = vld [vmem:[%s3 + $0x24] sm:$0xf]
    %v169 = vld [vmem:[%s3 + $0x28] sm:$0xf]
    %v170 = vld [vmem:[%s3 + $0x2c] sm:$0xf]
    %v171 = vld [vmem:[%s3 + $0x30] sm:$0xf]
    %v172 = vld [vmem:[%s3 + $0x34] sm:$0xf]
    %v173 = vld [vmem:[%s3 + $0x38] sm:$0xf]
    %v174 = vld [vmem:[%s3 + $0x3c] sm:$0xf]
    %v175 = vld [vmem:[%s4] sm:$0x1]
    %v177 = vlaneseq
    %v178 = vshrl.u32 %v177, 7
    %v179 = vsub.s32 0, %v178
    %v180 = vrot.slane %v175, %v179
    %v198 = vunpack.c.l.b16 %v159
    %v199 = vunpack.c.l.b16 %v160
    %v200 = vunpack.c.l.b16 %v161
    %v201 = vunpack.c.l.b16 %v162
    %v202 = vunpack.c.l.b16 %v163
    %v203 = vunpack.c.l.b16 %v164
    %v204 = vunpack.c.l.b16 %v165
    %v205 = vunpack.c.l.b16 %v166
    %v206 = vunpack.c.l.b16 %v167
    %v207 = vunpack.c.l.b16 %v168
    %v208 = vunpack.c.l.b16 %v169
    %v209 = vunpack.c.l.b16 %v170
    %v210 = vunpack.c.l.b16 %v171
    %v211 = vunpack.c.l.b16 %v172
    %v212 = vunpack.c.l.b16 %v173
    %v213 = vunpack.c.l.b16 %v174
    %v214 = vpack.c.b16 %v199, %v198
    %v215 = vpack.c.b16 %v201, %v200
    %v216 = vpack.c.b16 %v203, %v202
    %v217 = vpack.c.b16 %v205, %v204
    %v218 = vpack.c.b16 %v207, %v206
    %v219 = vpack.c.b16 %v209, %v208
    %v220 = vpack.c.b16 %v211, %v210
    %v221 = vpack.c.b16 %v213, %v212
    %230 = vmatprep.subr.bf16.mxu0 0
    %231 = vmatpush1.bf16.msra.mxu0 %v214
    %232 = vmatprep.subr.bf16.mxu0 0
    %233 = vmatpush1.bf16.msra.mxu0 %v215
    %234 = vmatprep.subr.bf16.mxu0 0
    %235 = vmatpush1.bf16.msra.mxu0 %v216
    %236 = vmatprep.subr.bf16.mxu0 0
    %237 = vmatpush1.bf16.msra.mxu0 %v217
    %238 = vmatprep.subr.bf16.mxu0 0
    %239 = vmatpush1.bf16.msra.mxu0 %v218
    %240 = vmatprep.subr.bf16.mxu0 0
    %241 = vmatpush1.bf16.msra.mxu0 %v219
    %242 = vmatprep.subr.bf16.mxu0 0
    %243 = vmatpush1.bf16.msra.mxu0 %v220
    %244 = vmatprep.subr.bf16.mxu0 0
    %245 = vmatpush1.bf16.msra.mxu0 %v221
    %246 = vmatprep.subr.bf16.mxu0 0
    %247 = vmatpush1.bf16.msra.mxu0 0
    %248 = vmatprep.subr.bf16.mxu0 0
    %249 = vmatpush1.bf16.msra.mxu0 0
    %250 = vmatprep.subr.bf16.mxu0 0
    %251 = vmatpush1.bf16.msra.mxu0 0
    %252 = vmatprep.subr.bf16.mxu0 0
    %253 = vmatpush1.bf16.msra.mxu0 0
    %254 = vmatprep.subr.bf16.mxu0 0
    %255 = vmatpush1.bf16.msra.mxu0 0
    %256 = vmatprep.subr.bf16.mxu0 0
    %257 = vmatpush1.bf16.msra.mxu0 0
    %258 = vmatprep.subr.bf16.mxu0 0
    %259 = vmatpush1.bf16.msra.mxu0 0
    %260 = vmatprep.subr.bf16.mxu0 0
    %261 = vmatpush1.bf16.msra.mxu0 0
    %262 = vmatprep.mubr.bf16.mxu0 0
    %263 = vmatmul.mubr.bf16.gmra.mrb[0].mxu0 %v158
    %v264 = vpop.f32.mrb[0].mxu0
    %v265 = vadd.f32 %v180, %v264
    %v266 = vpop.f32.mrb[0].mxu0
    %v267 = vpop.f32.mrb[0].mxu0
    %v268 = vpop.f32.mrb[0].mxu0
    %269 = vdwg.mxu0
    %v270 = vmax.f32 %v265, 0.0
    %v271 = vpack.c.bf16 %v270, %v270
    %v272 = vld [vmem:[%s5] sm:$0xf]
    %v273 = vld [vmem:[%s5 + $0x4] sm:$0xf]
    %v274 = vld [vmem:[%s5 + $0x8] sm:$0xf]
    %v275 = vld [vmem:[%s5 + $0xc] sm:$0xf]
    %v276 = vld [vmem:[%s5 + $0x10] sm:$0xf]
    %v277 = vld [vmem:[%s5 + $0x14] sm:$0xf]
    %v278 = vld [vmem:[%s5 + $0x18] sm:$0xf]
    %v279 = vld [vmem:[%s5 + $0x1c] sm:$0xf]
    %v280 = vld [vmem:[%s5 + $0x20] sm:$0xf]
    %v281 = vld [vmem:[%s5 + $0x24] sm:$0xf]
    %v282 = vld [vmem:[%s5 + $0x28] sm:$0xf]
    %v283 = vld [vmem:[%s5 + $0x2c] sm:$0xf]
    %v284 = vld [vmem:[%s5 + $0x30] sm:$0xf]
    %v285 = vld [vmem:[%s5 + $0x34] sm:$0xf]
    %v286 = vld [vmem:[%s5 + $0x38] sm:$0xf]
    %v287 = vld [vmem:[%s5 + $0x3c] sm:$0xf]
    %v288 = vld [vmem:[%s6] sm:$0x1]
    %v290 = vlaneseq
    %v291 = vshrl.u32 %v290, 7
    %v292 = vsub.s32 0, %v291
    %v293 = vrot.slane %v288, %v292
    %v311 = vunpack.c.l.b16 %v272
    %v312 = vunpack.c.l.b16 %v273
    %v313 = vunpack.c.l.b16 %v274
    %v314 = vunpack.c.l.b16 %v275
    %v315 = vunpack.c.l.b16 %v276
    %v316 = vunpack.c.l.b16 %v277
    %v317 = vunpack.c.l.b16 %v278
    %v318 = vunpack.c.l.b16 %v279
    %v319 = vunpack.c.l.b16 %v280
    %v320 = vunpack.c.l.b16 %v281
    %v321 = vunpack.c.l.b16 %v282
    %v322 = vunpack.c.l.b16 %v283
    %v323 = vunpack.c.l.b16 %v284
    %v324 = vunpack.c.l.b16 %v285
    %v325 = vunpack.c.l.b16 %v286
    %v326 = vunpack.c.l.b16 %v287
    %v327 = vpack.c.b16 %v312, %v311
    %v328 = vpack.c.b16 %v314, %v313
    %v329 = vpack.c.b16 %v316, %v315
    %v330 = vpack.c.b16 %v318, %v317
    %v331 = vpack.c.b16 %v320, %v319
    %v332 = vpack.c.b16 %v322, %v321
    %v333 = vpack.c.b16 %v324, %v323
    %v334 = vpack.c.b16 %v326, %v325
    %343 = vmatprep.subr.bf16.mxu0 0
    %344 = vmatpush1.bf16.msra.mxu0 %v327
    %345 = vmatprep.subr.bf16.mxu0 0
    %346 = vmatpush1.bf16.msra.mxu0 %v328
    %347 = vmatprep.subr.bf16.mxu0 0
    %348 = vmatpush1.bf16.msra.mxu0 %v329
    %349 = vmatprep.subr.bf16.mxu0 0
    %350 = vmatpush1.bf16.msra.mxu0 %v330
    %351 = vmatprep.subr.bf16.mxu0 0
    %352 = vmatpush1.bf16.msra.mxu0 %v331
    %353 = vmatprep.subr.bf16.mxu0 0
    %354 = vmatpush1.bf16.msra.mxu0 %v332
    %355 = vmatprep.subr.bf16.mxu0 0
    %356 = vmatpush1.bf16.msra.mxu0 %v333
    %357 = vmatprep.subr.bf16.mxu0 0
    %358 = vmatpush1.bf16.msra.mxu0 %v334
    %359 = vmatprep.subr.bf16.mxu0 0
    %360 = vmatpush1.bf16.msra.mxu0 0
    %361 = vmatprep.subr.bf16.mxu0 0
    %362 = vmatpush1.bf16.msra.mxu0 0
    %363 = vmatprep.subr.bf16.mxu0 0
    %364 = vmatpush1.bf16.msra.mxu0 0
    %365 = vmatprep.subr.bf16.mxu0 0
    %366 = vmatpush1.bf16.msra.mxu0 0
    %367 = vmatprep.subr.bf16.mxu0 0
    %368 = vmatpush1.bf16.msra.mxu0 0
    %369 = vmatprep.subr.bf16.mxu0 0
    %370 = vmatpush1.bf16.msra.mxu0 0
    %371 = vmatprep.subr.bf16.mxu0 0
    %372 = vmatpush1.bf16.msra.mxu0 0
    %373 = vmatprep.subr.bf16.mxu0 0
    %374 = vmatpush1.bf16.msra.mxu0 0
    %375 = vmatprep.mubr.bf16.mxu0 0
    %376 = vmatmul.mubr.bf16.gmra.mrb[0].mxu0 %v271
    %v377 = vpop.f32.mrb[0].mxu0
    %v378 = vadd.f32 %v293, %v377
    %v379 = vpop.f32.mrb[0].mxu0
    %v380 = vpop.f32.mrb[0].mxu0
    %v381 = vpop.f32.mrb[0].mxu0
    %382 = vdwg.mxu0
    %v383 = vmax.f32 %v378, 0.0
    %v384 = vpack.c.bf16 %v383, %v383
    %v385 = vld [vmem:[#allocation5] sm:$0xf]
    %v386 = vld [vmem:[#allocation5 + $0x4] sm:$0xf]
    %v387 = vld [vmem:[#allocation5 + $0x8] sm:$0xf]
    %v388 = vld [vmem:[#allocation5 + $0xc] sm:$0xf]
    %v389 = vld [vmem:[#allocation5 + $0x10] sm:$0xf]
    %v390 = vld [vmem:[#allocation5 + $0x14] sm:$0xf]
    %v391 = vld [vmem:[#allocation5 + $0x18] sm:$0xf]
    %v392 = vld [vmem:[#allocation5 + $0x1c] sm:$0xf]
    %v393 = vld [vmem:[#allocation5 + $0x20] sm:$0xf]
    %v394 = vld [vmem:[#allocation5 + $0x24] sm:$0xf]
    %v395 = vld [vmem:[#allocation5 + $0x28] sm:$0xf]
    %v396 = vld [vmem:[#allocation5 + $0x2c] sm:$0xf]
    %v397 = vld [vmem:[#allocation5 + $0x30] sm:$0xf]
    %v398 = vld [vmem:[#allocation5 + $0x34] sm:$0xf]
    %v399 = vld [vmem:[#allocation5 + $0x38] sm:$0xf]
    %v400 = vld [vmem:[#allocation5 + $0x3c] sm:$0xf]
    %v401 = vld [vmem:[%s8] sm:$0x1]
    %v403 = vlaneseq
    %v404 = vshrl.u32 %v403, 7
    %v405 = vsub.s32 0, %v404
    %v406 = vrot.slane %v401, %v405
    %v424 = vunpack.c.l.b16 %v385
    %v425 = vunpack.c.l.b16 %v386
    %v426 = vunpack.c.l.b16 %v387
    %v427 = vunpack.c.l.b16 %v388
    %v428 = vunpack.c.l.b16 %v389
    %v429 = vunpack.c.l.b16 %v390
    %v430 = vunpack.c.l.b16 %v391
    %v431 = vunpack.c.l.b16 %v392
    %v432 = vunpack.c.l.b16 %v393
    %v433 = vunpack.c.l.b16 %v394
    %v434 = vunpack.c.l.b16 %v395
    %v435 = vunpack.c.l.b16 %v396
    %v436 = vunpack.c.l.b16 %v397
    %v437 = vunpack.c.l.b16 %v398
    %v438 = vunpack.c.l.b16 %v399
    %v439 = vunpack.c.l.b16 %v400
    %v440 = vpack.c.b16 %v425, %v424
    %v441 = vpack.c.b16 %v427, %v426
    %v442 = vpack.c.b16 %v429, %v428
    %v443 = vpack.c.b16 %v431, %v430
    %v444 = vpack.c.b16 %v433, %v432
    %v445 = vpack.c.b16 %v435, %v434
    %v446 = vpack.c.b16 %v437, %v436
    %v447 = vpack.c.b16 %v439, %v438
    %456 = vmatprep.subr.bf16.mxu0 0
    %457 = vmatpush1.bf16.msra.mxu0 %v440
    %458 = vmatprep.subr.bf16.mxu0 0
    %459 = vmatpush1.bf16.msra.mxu0 %v441
    %460 = vmatprep.subr.bf16.mxu0 0
    %461 = vmatpush1.bf16.msra.mxu0 %v442
    %462 = vmatprep.subr.bf16.mxu0 0
    %463 = vmatpush1.bf16.msra.mxu0 %v443
    %464 = vmatprep.subr.bf16.mxu0 0
    %465 = vmatpush1.bf16.msra.mxu0 %v444
    %466 = vmatprep.subr.bf16.mxu0 0
    %467 = vmatpush1.bf16.msra.mxu0 %v445
    %468 = vmatprep.subr.bf16.mxu0 0
    %469 = vmatpush1.bf16.msra.mxu0 %v446
    %470 = vmatprep.subr.bf16.mxu0 0
    %471 = vmatpush1.bf16.msra.mxu0 %v447
    %472 = vmatprep.subr.bf16.mxu0 0
    %473 = vmatpush1.bf16.msra.mxu0 0
    %474 = vmatprep.subr.bf16.mxu0 0
    %475 = vmatpush1.bf16.msra.mxu0 0
    %476 = vmatprep.subr.bf16.mxu0 0
    %477 = vmatpush1.bf16.msra.mxu0 0
    %478 = vmatprep.subr.bf16.mxu0 0
    %479 = vmatpush1.bf16.msra.mxu0 0
    %480 = vmatprep.subr.bf16.mxu0 0
    %481 = vmatpush1.bf16.msra.mxu0 0
    %482 = vmatprep.subr.bf16.mxu0 0
    %483 = vmatpush1.bf16.msra.mxu0 0
    %484 = vmatprep.subr.bf16.mxu0 0
    %485 = vmatpush1.bf16.msra.mxu0 0
    %486 = vmatprep.subr.bf16.mxu0 0
    %487 = vmatpush1.bf16.msra.mxu0 0
    %488 = vmatprep.mubr.bf16.mxu0 0
    %489 = vmatmul.mubr.bf16.gmra.mrb[0].mxu0 %v384
    %v490 = vpop.f32.mrb[0].mxu0
    %v491 = vadd.f32 %v406, %v490
    %v492 = vpop.f32.mrb[0].mxu0
    %v493 = vpop.f32.mrb[0].mxu0
    %v494 = vpop.f32.mrb[0].mxu0
    %495 = vdwg.mxu0
    %v496 = vmax.f32 %v491, 0.0
    %v497 = vpack.c.bf16 %v496, %v496
    %v498 = vld [vmem:[#allocation7] sm:$0xf]
    %v499 = vld [vmem:[#allocation7 + $0x4] sm:$0xf]
    %v500 = vld [vmem:[#allocation7 + $0x8] sm:$0xf]
    %v501 = vld [vmem:[#allocation7 + $0xc] sm:$0xf]
    %v502 = vld [vmem:[#allocation7 + $0x10] sm:$0xf]
    %v503 = vld [vmem:[#allocation7 + $0x14] sm:$0xf]
    %v504 = vld [vmem:[#allocation7 + $0x18] sm:$0xf]
    %v505 = vld [vmem:[#allocation7 + $0x1c] sm:$0xf]
    %v506 = vld [vmem:[#allocation7 + $0x20] sm:$0xf]
    %v507 = vld [vmem:[#allocation7 + $0x24] sm:$0xf]
    %v508 = vld [vmem:[#allocation7 + $0x28] sm:$0xf]
    %v509 = vld [vmem:[#allocation7 + $0x2c] sm:$0xf]
    %v510 = vld [vmem:[#allocation7 + $0x30] sm:$0xf]
    %v511 = vld [vmem:[#allocation7 + $0x34] sm:$0xf]
    %v512 = vld [vmem:[#allocation7 + $0x38] sm:$0xf]
    %v513 = vld [vmem:[#allocation7 + $0x3c] sm:$0xf]
    %v530 = vunpack.c.l.b16 %v498
    %v531 = vunpack.c.l.b16 %v499
    %v532 = vunpack.c.l.b16 %v500
    %v533 = vunpack.c.l.b16 %v501
    %v534 = vunpack.c.l.b16 %v502
    %v535 = vunpack.c.l.b16 %v503
    %v536 = vunpack.c.l.b16 %v504
    %v537 = vunpack.c.l.b16 %v505
    %v538 = vunpack.c.l.b16 %v506
    %v539 = vunpack.c.l.b16 %v507
    %v540 = vunpack.c.l.b16 %v508
    %v541 = vunpack.c.l.b16 %v509
    %v542 = vunpack.c.l.b16 %v510
    %v543 = vunpack.c.l.b16 %v511
    %v544 = vunpack.c.l.b16 %v512
    %v545 = vunpack.c.l.b16 %v513
    %v546 = vpack.c.b16 %v531, %v530
    %v547 = vpack.c.b16 %v533, %v532
    %v548 = vpack.c.b16 %v535, %v534
    %v549 = vpack.c.b16 %v537, %v536
    %v550 = vpack.c.b16 %v539, %v538
    %v551 = vpack.c.b16 %v541, %v540
    %v552 = vpack.c.b16 %v543, %v542
    %v553 = vpack.c.b16 %v545, %v544
    %562 = vmatprep.subr.bf16.mxu0 0
    %563 = vmatpush1.bf16.msra.mxu0 %v546
    %564 = vmatprep.subr.bf16.mxu0 0
    %565 = vmatpush1.bf16.msra.mxu0 %v547
    %566 = vmatprep.subr.bf16.mxu0 0
    %567 = vmatpush1.bf16.msra.mxu0 %v548
    %568 = vmatprep.subr.bf16.mxu0 0
    %569 = vmatpush1.bf16.msra.mxu0 %v549
    %570 = vmatprep.subr.bf16.mxu0 0
    %571 = vmatpush1.bf16.msra.mxu0 %v550
    %572 = vmatprep.subr.bf16.mxu0 0
    %573 = vmatpush1.bf16.msra.mxu0 %v551
    %574 = vmatprep.subr.bf16.mxu0 0
    %575 = vmatpush1.bf16.msra.mxu0 %v552
    %576 = vmatprep.subr.bf16.mxu0 0
    %577 = vmatpush1.bf16.msra.mxu0 %v553
    %578 = vmatprep.subr.bf16.mxu0 0
    %579 = vmatpush1.bf16.msra.mxu0 0
    %580 = vmatprep.subr.bf16.mxu0 0
    %581 = vmatpush1.bf16.msra.mxu0 0
    %582 = vmatprep.subr.bf16.mxu0 0
    %583 = vmatpush1.bf16.msra.mxu0 0
    %584 = vmatprep.subr.bf16.mxu0 0
    %585 = vmatpush1.bf16.msra.mxu0 0
    %586 = vmatprep.subr.bf16.mxu0 0
    %587 = vmatpush1.bf16.msra.mxu0 0
    %588 = vmatprep.subr.bf16.mxu0 0
    %589 = vmatpush1.bf16.msra.mxu0 0
    %590 = vmatprep.subr.bf16.mxu0 0
    %591 = vmatpush1.bf16.msra.mxu0 0
    %592 = vmatprep.subr.bf16.mxu0 0
    %593 = vmatpush1.bf16.msra.mxu0 0
    %594 = vmatprep.mubr.bf16.mxu0 0
    %595 = vmatmul.mubr.bf16.gmra.mrb[0].mxu0 %v497
    %v596 = vpop.f32.mrb[0].mxu0
    %v597 = vadd.f32 0.0, %v596
    %v598 = vpop.f32.mrb[0].mxu0
    %v599 = vpop.f32.mrb[0].mxu0
    %v600 = vpop.f32.mrb[0].mxu0
    %601 = vdwg.mxu0
    %v602 = vmax.f32 %v597, 0.0
    %v603 = vpack.c.bf16 %v602, %v602
    %v604 = vld [vmem:[%s10] sm:$0xf]
    %v605 = vld [vmem:[%s10 + $0x4] sm:$0xf]
    %v606 = vld [vmem:[%s10 + $0x8] sm:$0xf]
    %v607 = vld [vmem:[%s10 + $0xc] sm:$0xf]
    %v608 = vld [vmem:[%s10 + $0x10] sm:$0xf]
    %v609 = vld [vmem:[%s10 + $0x14] sm:$0xf]
    %v610 = vld [vmem:[%s10 + $0x18] sm:$0xf]
    %v611 = vld [vmem:[%s10 + $0x1c] sm:$0xf]
    %v612 = vld [vmem:[%s10 + $0x20] sm:$0xf]
    %v613 = vld [vmem:[%s10 + $0x24] sm:$0xf]
    %v614 = vld [vmem:[%s10 + $0x28] sm:$0xf]
    %v615 = vld [vmem:[%s10 + $0x2c] sm:$0xf]
    %v616 = vld [vmem:[%s10 + $0x30] sm:$0xf]
    %v617 = vld [vmem:[%s10 + $0x34] sm:$0xf]
    %v618 = vld [vmem:[%s10 + $0x38] sm:$0xf]
    %v619 = vld [vmem:[%s10 + $0x3c] sm:$0xf]
    %v620 = vld [vmem:[%s11] sm:$0x1]
    %v622 = vlaneseq
    %v623 = vshrl.u32 %v622, 7
    %v624 = vsub.s32 0, %v623
    %v625 = vrot.slane %v620, %v624
    %v643 = vunpack.c.l.b16 %v604
    %v644 = vunpack.c.l.b16 %v605
    %v645 = vunpack.c.l.b16 %v606
    %v646 = vunpack.c.l.b16 %v607
    %v647 = vunpack.c.l.b16 %v608
    %v648 = vunpack.c.l.b16 %v609
    %v649 = vunpack.c.l.b16 %v610
    %v650 = vunpack.c.l.b16 %v611
    %v651 = vunpack.c.l.b16 %v612
    %v652 = vunpack.c.l.b16 %v613
    %v653 = vunpack.c.l.b16 %v614
    %v654 = vunpack.c.l.b16 %v615
    %v655 = vunpack.c.l.b16 %v616
    %v656 = vunpack.c.l.b16 %v617
    %v657 = vunpack.c.l.b16 %v618
    %v658 = vunpack.c.l.b16 %v619
    %v659 = vpack.c.b16 %v644, %v643
    %v660 = vpack.c.b16 %v646, %v645
    %v661 = vpack.c.b16 %v648, %v647
    %v662 = vpack.c.b16 %v650, %v649
    %v663 = vpack.c.b16 %v652, %v651
    %v664 = vpack.c.b16 %v654, %v653
    %v665 = vpack.c.b16 %v656, %v655
    %v666 = vpack.c.b16 %v658, %v657
    %675 = vmatprep.subr.bf16.mxu0 0
    %676 = vmatpush1.bf16.msra.mxu0 %v659
    %677 = vmatprep.subr.bf16.mxu0 0
    %678 = vmatpush1.bf16.msra.mxu0 %v660
    %679 = vmatprep.subr.bf16.mxu0 0
    %680 = vmatpush1.bf16.msra.mxu0 %v661
    %681 = vmatprep.subr.bf16.mxu0 0
    %682 = vmatpush1.bf16.msra.mxu0 %v662
    %683 = vmatprep.subr.bf16.mxu0 0
    %684 = vmatpush1.bf16.msra.mxu0 %v663
    %685 = vmatprep.subr.bf16.mxu0 0
    %686 = vmatpush1.bf16.msra.mxu0 %v664
    %687 = vmatprep.subr.bf16.mxu0 0
    %688 = vmatpush1.bf16.msra.mxu0 %v665
    %689 = vmatprep.subr.bf16.mxu0 0
    %690 = vmatpush1.bf16.msra.mxu0 %v666
    %691 = vmatprep.subr.bf16.mxu0 0
    %692 = vmatpush1.bf16.msra.mxu0 0
    %693 = vmatprep.subr.bf16.mxu0 0
    %694 = vmatpush1.bf16.msra.mxu0 0
    %695 = vmatprep.subr.bf16.mxu0 0
    %696 = vmatpush1.bf16.msra.mxu0 0
    %697 = vmatprep.subr.bf16.mxu0 0
    %698 = vmatpush1.bf16.msra.mxu0 0
    %699 = vmatprep.subr.bf16.mxu0 0
    %700 = vmatpush1.bf16.msra.mxu0 0
    %701 = vmatprep.subr.bf16.mxu0 0
    %702 = vmatpush1.bf16.msra.mxu0 0
    %703 = vmatprep.subr.bf16.mxu0 0
    %704 = vmatpush1.bf16.msra.mxu0 0
    %705 = vmatprep.subr.bf16.mxu0 0
    %706 = vmatpush1.bf16.msra.mxu0 0
    %707 = vmatprep.mubr.bf16.mxu0 0
    %708 = vmatmul.mubr.bf16.gmra.mrb[0].mxu0 %v603
    %v709 = vpop.f32.mrb[0].mxu0
    %v710 = vadd.f32 %v625, %v709
    %v711 = vpop.f32.mrb[0].mxu0
    %v712 = vpop.f32.mrb[0].mxu0
    %v713 = vpop.f32.mrb[0].mxu0
    %714 = vdwg.mxu0
    %715 = vst.msk [vmem:[#allocation8] sm:$0xff] %vm109, %v710
    %v716 = vld [vmem:[%s12] sm:$0xf]
    %v717 = vld [vmem:[%s12 + $0x4] sm:$0xf]
    %v718 = vld [vmem:[%s12 + $0x8] sm:$0xf]
    %v719 = vld [vmem:[%s12 + $0xc] sm:$0xf]
    %v720 = vld [vmem:[%s12 + $0x10] sm:$0xf]
    %v721 = vld [vmem:[%s12 + $0x14] sm:$0xf]
    %v722 = vld [vmem:[%s12 + $0x18] sm:$0xf]
    %v723 = vld [vmem:[%s12 + $0x1c] sm:$0xf]
    %v724 = vld [vmem:[%s12 + $0x20] sm:$0xf]
    %v725 = vld [vmem:[%s12 + $0x24] sm:$0xf]
    %v726 = vld [vmem:[%s12 + $0x28] sm:$0xf]
    %v727 = vld [vmem:[%s12 + $0x2c] sm:$0xf]
    %v728 = vld [vmem:[%s12 + $0x30] sm:$0xf]
    %v729 = vld [vmem:[%s12 + $0x34] sm:$0xf]
    %v730 = vld [vmem:[%s12 + $0x38] sm:$0xf]
    %v731 = vld [vmem:[%s12 + $0x3c] sm:$0xf]
    %v732 = vld [vmem:[%s13] sm:$0x1]
    %v734 = vlaneseq
    %v735 = vshrl.u32 %v734, 7
    %v736 = vsub.s32 0, %v735
    %v737 = vrot.slane %v732, %v736
    %v755 = vunpack.c.l.b16 %v716
    %v756 = vunpack.c.l.b16 %v717
    %v757 = vunpack.c.l.b16 %v718
    %v758 = vunpack.c.l.b16 %v719
    %v759 = vunpack.c.l.b16 %v720
    %v760 = vunpack.c.l.b16 %v721
    %v761 = vunpack.c.l.b16 %v722
    %v762 = vunpack.c.l.b16 %v723
    %v763 = vunpack.c.l.b16 %v724
    %v764 = vunpack.c.l.b16 %v725
    %v765 = vunpack.c.l.b16 %v726
    %v766 = vunpack.c.l.b16 %v727
    %v767 = vunpack.c.l.b16 %v728
    %v768 = vunpack.c.l.b16 %v729
    %v769 = vunpack.c.l.b16 %v730
    %v770 = vunpack.c.l.b16 %v731
    %v771 = vpack.c.b16 %v756, %v755
    %v772 = vpack.c.b16 %v758, %v757
    %v773 = vpack.c.b16 %v760, %v759
    %v774 = vpack.c.b16 %v762, %v761
    %v775 = vpack.c.b16 %v764, %v763
    %v776 = vpack.c.b16 %v766, %v765
    %v777 = vpack.c.b16 %v768, %v767
    %v778 = vpack.c.b16 %v770, %v769
    %787 = vmatprep.subr.bf16.mxu0 0
    %788 = vmatpush1.bf16.msra.mxu0 %v771
    %789 = vmatprep.subr.bf16.mxu0 0
    %790 = vmatpush1.bf16.msra.mxu0 %v772
    %791 = vmatprep.subr.bf16.mxu0 0
    %792 = vmatpush1.bf16.msra.mxu0 %v773
    %793 = vmatprep.subr.bf16.mxu0 0
    %794 = vmatpush1.bf16.msra.mxu0 %v774
    %795 = vmatprep.subr.bf16.mxu0 0
    %796 = vmatpush1.bf16.msra.mxu0 %v775
    %797 = vmatprep.subr.bf16.mxu0 0
    %798 = vmatpush1.bf16.msra.mxu0 %v776
    %799 = vmatprep.subr.bf16.mxu0 0
    %800 = vmatpush1.bf16.msra.mxu0 %v777
    %801 = vmatprep.subr.bf16.mxu0 0
    %802 = vmatpush1.bf16.msra.mxu0 %v778
    %803 = vmatprep.subr.bf16.mxu0 0
    %804 = vmatpush1.bf16.msra.mxu0 0
    %805 = vmatprep.subr.bf16.mxu0 0
    %806 = vmatpush1.bf16.msra.mxu0 0
    %807 = vmatprep.subr.bf16.mxu0 0
    %808 = vmatpush1.bf16.msra.mxu0 0
    %809 = vmatprep.subr.bf16.mxu0 0
    %810 = vmatpush1.bf16.msra.mxu0 0
    %811 = vmatprep.subr.bf16.mxu0 0
    %812 = vmatpush1.bf16.msra.mxu0 0
    %813 = vmatprep.subr.bf16.mxu0 0
    %814 = vmatpush1.bf16.msra.mxu0 0
    %815 = vmatprep.subr.bf16.mxu0 0
    %816 = vmatpush1.bf16.msra.mxu0 0
    %817 = vmatprep.subr.bf16.mxu0 0
    %818 = vmatpush1.bf16.msra.mxu0 0
    %819 = vmatprep.mubr.bf16.mxu0 0
    %820 = vmatmul.mubr.bf16.gmra.mrb[0].mxu0 %v603
    %v821 = vpop.f32.mrb[0].mxu0
    %v822 = vadd.f32 %v737, %v821
    %v823 = vpop.f32.mrb[0].mxu0
    %v824 = vpop.f32.mrb[0].mxu0
    %v825 = vpop.f32.mrb[0].mxu0
    %826 = vdwg.mxu0
    %vm827 = vcmask 39936
    %828 = vst.msk [vmem:[#allocation9] sm:$0xff] %vm827, %v822
    // Predicated region
    $region70: #{tpu_custom_call.1} parent=1 // pred_check
      _
    $region71: #{tpu_custom_call.1} parent=1 // pred_check_branch
      %830 = sbr.rel (0) target = $region73
    $region72: #{tpu_custom_call.1} parent=1 // pred_region
      %s832 = ssub.s32 128, 128
      %833 = vsyncadd [#allocation4], %s832
      %s835 = sshll.u32 [#allocation8], 4
      %s836 = int_to_ptr.vmem [resolvable:$true] %s835
      %838 = dma.vmem_to_hbm [thread:$0]  %s836, 128, %s14, [#allocation4]
    $region73: #{tpu_custom_call.1} parent=1 // pred_fallthru
      _
    // Predicated region
    $region74: #{tpu_custom_call.1} parent=1 // pred_check
      _
    $region75: #{tpu_custom_call.1} parent=1 // pred_check_branch
      %840 = sbr.rel (0) target = $region77
    $region76: #{tpu_custom_call.1} parent=1 // pred_region
      %s842 = ssub.s32 128, 128
      %843 = vsyncadd [#allocation10], %s842
      %s845 = sshll.u32 [#allocation9], 4
      %s846 = int_to_ptr.vmem [resolvable:$true] %s845
      %848 = dma.vmem_to_hbm [thread:$0]  %s846, 128, %s15, [#allocation10]
    $region77: #{tpu_custom_call.1} parent=1 // pred_fallthru
      _
    // Predicated region
    $region78: #{tpu_custom_call.1} parent=1 // pred_check
      _
    $region79: #{tpu_custom_call.1} parent=1 // pred_check_branch
      %850 = sbr.rel (0) target = $region81
    $region80: #{tpu_custom_call.1} parent=1 // pred_region
      %851 = dma.done [#allocation4], 128
    $region81: #{tpu_custom_call.1} parent=1 // pred_fallthru
      _
    // Predicated region
    $region82: #{tpu_custom_call.1} parent=1 // pred_check
      _
    $region83: #{tpu_custom_call.1} parent=1 // pred_check_branch
      %853 = sbr.rel (0) target = $region85
    $region84: #{tpu_custom_call.1} parent=1 // pred_region
      %854 = dma.done [#allocation10], 128
    $region85: #{tpu_custom_call.1} parent=1 // pred_fallthru
      _
    %855 = vsyncpa [#allocation3], 1
    %856 = vsyncpa [#allocation6], 1
    %857 = vsyncpa [#allocation4], 1
    %858 = vsyncpa [#allocation10], 1

</llo_original>
